<compile_context>
chip_gen: v5e
topology: v5e:2x2
jax: 0.10.0
libtpu: 0.0.40
codegen_flags: <defaults>
</compile_context>

<pallas_src>
import jax
import jax.numpy as jnp
from jax.experimental import pallas as pl
from jax.experimental.pallas import tpu as pltpu


def _round_up(x, m):
    return ((x + m - 1) // m) * m


def _make_kernel(tn, native_bf16_mul):
    def kernel(beta_ref, adj_ref, thr_ref, conf_ref, out_ref):
        # beta_ref: (1,) f32 in SMEM; adj_ref: (TM, TN) io_dtype;
        # thr_ref: (TM, 1) f32; conf_ref: (1, N_conf) f32 (fully resident);
        # out_ref: (TM, TN) io_dtype.
        j = pl.program_id(1)
        start = j * tn
        if tn % 128 == 0:
            start = pl.multiple_of(start, 128)      # lane-aligned slice of the resident row
        conf_tile = conf_ref[:, pl.ds(start, tn)]   # (1, TN) f32

        # Hoist the /0.5 off the (TM, TN) tile: work with d/2 directly.
        half_conf = 0.5 * conf_tile                 # O(TN) VPU work
        half_thr = 0.5 * thr_ref[...]               # O(TM) VPU work
        d_half = half_conf - half_thr               # (TM, TN), one VPU sub per element

        # sigmoid(d)/0.5 == 1 + tanh(d/2)  — single EUP transcendental per element.
        weight = 1.0 + jnp.tanh(d_half)
        beta = beta_ref[0]
        # weight >= 1  <=>  d >= 0 (boundary d==0 -> weight==1, matches torch up to
        # f32 rounding exactly at the threshold).
        mask = jnp.where(d_half >= 0.0, weight, beta)

        if native_bf16_mul:
            # bf16-native VPU multiply (v6e/v7x): avoids upcast/downcast of adj.
            out_ref[...] = adj_ref[...] * mask.astype(out_ref.dtype)
        else:
            out_ref[...] = (adj_ref[...].astype(jnp.float32) * mask).astype(out_ref.dtype)

    return kernel


def _chip_profile():
    """Best-effort chip introspection: (vmem_bytes, two_tensorcores, is_v5e)."""
    kind = ""
    try:
        kind = jax.devices()[0].device_kind.lower()
    except Exception:
        pass
    vmem_bytes = None
    try:
        vmem_bytes = int(pltpu.get_tpu_info().vmem_capacity_bytes)
    except Exception:
        pass
    if vmem_bytes is None:
        vmem_bytes = (128 << 20) if ("v5" in kind or "v6" in kind) else (64 << 20)
    two_tc = "v7" in kind          # v7x: 2 TensorCores per chip
    is_v5e = "v5" in kind          # v5e: no bf16 VPU, slowest HBM
    return vmem_bytes, two_tc, is_v5e


def _default_tiles(itemsize, vmem_bytes, is_v5e):
    """Pick (tm, tn): ~8 MiB blocks on 128-MiB-VMEM v6e, ~4 MiB on v5e / v7x."""
    tm = 1024
    target = (8 << 20) if (vmem_bytes >= (96 << 20) and not is_v5e) else (4 << 20)
    tn = max(128, (target // (tm * itemsize)) // 128 * 128)
    return tm, int(tn)


def sparse_ungsl_forward(learned_adj, thresholds, confidence_vector, beta,
                         *, tm=None, tn=None, io_dtype=None, donate_adj=False):
    """learned_adj: (N, N); thresholds: (N, 1); confidence_vector: (N,).

    Purely HBM-bandwidth bound: pass io_dtype=jnp.bfloat16 to halve traffic
    (recommended if bf16 adjacency is acceptable); the default preserves the
    exact f32 semantics of the PyTorch module. Mask math is always f32.
    donate_adj=True aliases the adjacency buffer in place (only saves memory
    when learned_adj.dtype == io_dtype; clobbers the caller's buffer).
    """
    n = learned_adj.shape[0]
    assert learned_adj.shape == (n, n)

    io_dtype = jnp.dtype(io_dtype) if io_dtype is not None else jnp.dtype(learned_adj.dtype)
    vmem_bytes, two_tc, is_v5e = _chip_profile()

    dtm, dtn = _default_tiles(io_dtype.itemsize, vmem_bytes, is_v5e)
    tm = dtm if tm is None else tm
    tn = dtn if tn is None else tn
    # Clamp to (8,128)-rounded extents: keeps output stores lane-dense for ragged N
    # (the pipeline pads partial edge blocks); small graphs become a single block.
    tm = min(tm, _round_up(n, 8))
    tn = min(tn, _round_up(n, 128))
    if two_tc and n >= 512:
        # Keep both v7x TensorCores busy: at least two blocks along a "parallel" axis.
        tm = min(tm, _round_up((n + 1) // 2, 8))

    grid_i = -(-n // tm)
    grid_j = -(-n // tn)

    adj = learned_adj.astype(io_dtype)
    thr = thresholds.reshape(n, 1).astype(jnp.float32)
    conf_row = confidence_vector.reshape(1, n).astype(jnp.float32)
    n_conf = grid_j * tn
    if n_conf > n:
        # Pad so in-kernel slices of the resident row are always in bounds.
        conf_row = jnp.pad(conf_row, ((0, 0), (0, n_conf - n)))
    beta_arr = jnp.asarray([beta], dtype=jnp.float32)

    # bf16*bf16 final multiply only where the VPU is bf16-native (v6e/v7x).
    native_bf16_mul = (io_dtype == jnp.bfloat16) and not is_v5e
    kernel = _make_kernel(tn, native_bf16_mul)

    # VMEM budget: double-buffered adj + out blocks (io_dtype) + f32 intermediates
    # for one live block + slack; loose cap on 128-MiB chips, 24..48 MiB on v7x.
    block_io = tm * tn * io_dtype.itemsize
    block_f32 = tm * tn * 4
    need = 4 * block_io + 2 * block_f32 + (2 << 20)
    if vmem_bytes >= (96 << 20):
        vmem_limit = min(max(need, 64 << 20), 100 << 20)
    else:
        vmem_limit = min(max(need, 24 << 20), 48 << 20)

    kwargs = {}
    if donate_adj:
        kwargs["input_output_aliases"] = {1: 0}   # input 1 is the adjacency

    # TODO(synk): opt-in block-sparse skip — accept a per-(tm,tn)-block nonzero bitmap
    # via scalar prefetch and pl.when-skip empty tiles to beat the dense HBM roofline.

    return pl.pallas_call(
        kernel,
        out_shape=jax.ShapeDtypeStruct((n, n), io_dtype),
        grid_spec=pltpu.PrefetchScalarGridSpec(
            num_scalar_prefetch=0,
            grid=(grid_i, grid_j),
            in_specs=[
                pl.BlockSpec(memory_space=pltpu.MemorySpace.SMEM),   # beta scalar
                pl.BlockSpec((tm, tn), lambda i, j: (i, j)),         # adjacency tile
                pl.BlockSpec((tm, 1), lambda i, j: (i, 0)),          # per-row thresholds
                pl.BlockSpec((1, n_conf), lambda i, j: (0, 0)),      # conf row, VMEM-resident
            ],
            out_specs=pl.BlockSpec((tm, tn), lambda i, j: (i, j)),
        ),
        compiler_params=pltpu.CompilerParams(
            dimension_semantics=("parallel", "parallel"),
            vmem_limit_bytes=int(vmem_limit),
        ),
        **kwargs,
    )(beta_arr, adj, thr, conf_row)


def sparse_ungsl_reference(learned_adj, thresholds, confidence_vector, beta):
    """Pure-JAX reference mirroring the PyTorch sparse-COO path (dense-equivalent)."""
    w = jax.nn.sigmoid(confidence_vector[None, :] - thresholds) / 0.5
    mask = jnp.where(w >= 1.0, w, beta)
    return learned_adj * mask


if __name__ == "__main__":
    key = jax.random.PRNGKey(0)
    k_adj, k_drop, k_ent = jax.random.split(key, 3)

    n_nodes = 256          # small synthetic graph
    init_value = 0.5       # conf.training['init_value']
    beta = 0.1             # conf.training['beta']

    # Deterministic synthetic parameters (no checkpoint load).
    thresholds = jnp.full((n_nodes, 1), init_value, dtype=jnp.float32)
    entropy = jax.random.uniform(k_ent, (n_nodes,), dtype=jnp.float32, minval=0.0, maxval=2.0)
    confidence_vector = jnp.exp(-entropy)  # torch.exp(-Entropy)

    # Synthetic "learned adjacency": dense with ~70% zeros (exercises the to_sparse path).
    dense = jax.random.uniform(k_adj, (n_nodes, n_nodes), dtype=jnp.float32)
    keep = jax.random.uniform(k_drop, (n_nodes, n_nodes)) < 0.3
    learned_adj = jnp.where(keep, dense, 0.0)

    ref = sparse_ungsl_reference(learned_adj, thresholds, confidence_vector, beta)

    # Exact-semantics f32 path (matches the PyTorch module).
    out = sparse_ungsl_forward(learned_adj, thresholds, confidence_vector, beta)
    out = jax.block_until_ready(out)
    assert out.shape == (n_nodes, n_nodes)
    assert out.dtype == learned_adj.dtype
    assert jnp.allclose(out, ref, atol=1e-5, rtol=1e-5), "f32 mismatch vs reference"

    # Recommended bandwidth-saving path: bf16 I/O (mask math stays f32).
    out_bf16 = sparse_ungsl_forward(learned_adj, thresholds, confidence_vector, beta,
                                    io_dtype=jnp.bfloat16)
    out_bf16 = jax.block_until_ready(out_bf16)
    assert out_bf16.dtype == jnp.bfloat16
    assert jnp.allclose(out_bf16.astype(jnp.float32), ref, atol=3e-2, rtol=3e-2), \
        "bf16 mismatch vs reference"

    print("KERNEL_OK")
</pallas_src>

<mosaic_0001>
module attributes {stable_mosaic.version = 11 : i64} {
  func.func @kernel(%arg0: i32, %arg1: i32, %arg2: memref<1xf32, #tpu.memory_space<smem>>, %arg3: memref<256x256xf32, #tpu.memory_space<vmem>>, %arg4: memref<256x1xf32, #tpu.memory_space<vmem>>, %arg5: memref<1x256xf32, #tpu.memory_space<vmem>>, %arg6: memref<256x256xf32, #tpu.memory_space<vmem>>) attributes {dimension_semantics = [#tpu.dimension_semantics<parallel>, #tpu.dimension_semantics<parallel>], iteration_bounds = array<i64: 1, 1>, scalar_prefetch = 0 : i64, scratch_operands = 0 : i64, tpu.core_type = #tpu.core_type<tc>, window_params = [{transform_indices = @transform_0, window_bounds = array<i64: 1>}, {transform_indices = @transform_1, window_bounds = array<i64: 256, 256>}, {transform_indices = @transform_2, window_bounds = array<i64: 256, 1>}, {pipeline_mode = #tpu.pipeline_mode<synchronous>, transform_indices = @transform_3, window_bounds = array<i64: 1, 256>}, {transform_indices = @transform_4, window_bounds = array<i64: 256, 256>}]} {
    %c256_i32 = arith.constant 256 : i32
    %0 = arith.muli %arg1, %c256_i32 : i32
    %1 = tpu.assume_multiple %0, 128 : i32
    %c0 = arith.constant 0 : index
    %2 = arith.index_cast %1 : i32 to index
    %3 = vector.load %arg5[%c0, %2] : memref<1x256xf32, #tpu.memory_space<vmem>>, vector<1x256xf32>
    %cst = arith.constant 5.000000e-01 : f32
    %4 = vector.broadcast %cst : f32 to vector<1x256xf32>
    %5 = arith.mulf %4, %3 : vector<1x256xf32>
    %c0_0 = arith.constant 0 : index
    %c0_1 = arith.constant 0 : index
    %6 = vector.load %arg4[%c0_0, %c0_1] : memref<256x1xf32, #tpu.memory_space<vmem>>, vector<256x1xf32>
    %cst_2 = arith.constant 5.000000e-01 : f32
    %7 = vector.broadcast %cst_2 : f32 to vector<256x1xf32>
    %8 = arith.mulf %7, %6 : vector<256x1xf32>
    %9 = vector.broadcast %5 : vector<1x256xf32> to vector<256x256xf32>
    %10 = vector.broadcast %8 : vector<256x1xf32> to vector<256x256xf32>
    %11 = arith.subf %9, %10 : vector<256x256xf32>
    %12 = math.tanh %11 : vector<256x256xf32>
    %cst_3 = arith.constant 1.000000e+00 : f32
    %13 = vector.broadcast %cst_3 : f32 to vector<256x256xf32>
    %14 = arith.addf %13, %12 : vector<256x256xf32>
    %c0_4 = arith.constant 0 : index
    %15 = memref.load %arg2[%c0_4] : memref<1xf32, #tpu.memory_space<smem>>
    %cst_5 = arith.constant 0.000000e+00 : f32
    %16 = vector.broadcast %cst_5 : f32 to vector<256x256xf32>
    %17 = arith.cmpf oge, %11, %16 : vector<256x256xf32>
    %18 = vector.broadcast %15 : f32 to vector<256x256xf32>
    %19 = arith.select %17, %14, %18 : vector<256x256xi1>, vector<256x256xf32>
    %c0_6 = arith.constant 0 : index
    %c0_7 = arith.constant 0 : index
    %20 = vector.load %arg3[%c0_6, %c0_7] : memref<256x256xf32, #tpu.memory_space<vmem>>, vector<256x256xf32>
    %21 = arith.mulf %20, %19 : vector<256x256xf32>
    %c0_8 = arith.constant 0 : index
    %c0_9 = arith.constant 0 : index
    %22 = vector.load %arg6[%c0_8, %c0_9] : memref<256x256xf32, #tpu.memory_space<vmem>>, vector<256x256xf32>
    tpu.vector_store %arg6[%c0_8, %c0_9], %21 {strides = array<i32>} : memref<256x256xf32, #tpu.memory_space<vmem>>, vector<256x256xf32>,
    return
  }
  func.func @transform_0(%arg0: i32, %arg1: i32) -> i32 {
    %c0_i32 = arith.constant 0 : i32
    %c0_i32_0 = arith.constant 0 : i32
    return %c0_i32 : i32
  }
  func.func @transform_1(%arg0: i32, %arg1: i32) -> (i32, i32) {
    %c0_i32 = arith.constant 0 : i32
    return %arg0, %arg1 : i32, i32
  }
  func.func @transform_2(%arg0: i32, %arg1: i32) -> (i32, i32) {
    %c0_i32 = arith.constant 0 : i32
    %c0_i32_0 = arith.constant 0 : i32
    return %arg0, %c0_i32 : i32, i32
  }
  func.func @transform_3(%arg0: i32, %arg1: i32) -> (i32, i32) {
    %c0_i32 = arith.constant 0 : i32
    %c0_i32_0 = arith.constant 0 : i32
    %c0_i32_1 = arith.constant 0 : i32
    return %c0_i32, %c0_i32_0 : i32, i32
  }
  func.func @transform_4(%arg0: i32, %arg1: i32) -> (i32, i32) {
    %c0_i32 = arith.constant 0 : i32
    return %arg0, %arg1 : i32, i32
  }
}

</mosaic_0001>

<llo_original>
// kernel: tpu_custom_call.1
$region0: #{tpu_custom_call.1}
  #allocation0 [shape = 'u32[]', space=smem, size = 0x4, offset = 0x4, fixed_abs, tag = 'smem constant byte address 0x4 - core index']
  #allocation1 [shape = 'u32[72,128]{1,0:T(1,128)}', space=vmem, size = 0x9000, scoped, tag = 'internal scratch']
  #allocation2 [shape = 'f32[1]{0:T(128)S(6)}', space=smem, size = 0x200, scoped, tag = 'scoped memory for tpu_custom_call.1']
  %s0 = inlined_call_operand.<no memory space> [shape: f32[1], index: 0, kind: input, shape index: {}]
  %s1 = inlined_call_operand.hbm [shape: f32[256,256], index: 1, kind: input, shape index: {}]
  %s2 = inlined_call_operand.vmem [shape: f32[256,1], index: 2, kind: input, shape index: {}]
  %s3 = inlined_call_operand.vmem [shape: f32[1,256], index: 3, kind: input, shape index: {}]
  %s4 = inlined_call_operand.hbm [shape: f32[256,256], index: 4, kind: output, shape index: {}]
  %s5 = sld [smem:[#allocation0]]
  $region30: #{tpu_custom_call.1} parent=0
    _
  %s7 = ssub.s32 1, %s5
  %s8 = scalar_select 0, %s7, %s5
  %9 = sst [smem:[#allocation2]] %s0
  $region1: #{tpu_custom_call.1} parent=0
    #allocation3 [shape = 'u8[262144]{0}', space=vmem, size = 0x40000, scoped, tag = 'input window, operand 1, single buffered']
    #allocation4 [shape = 's32[1]{0}', space=sflag, size = 0x4, scoped, tag = 'scoped memory for tpu_custom_call.1']
    #allocation5 [shape = 's32[1]{0}', space=sflag, size = 0x4, scoped, tag = 'scoped memory for tpu_custom_call.1']
    #allocation6 [shape = 'u8[262144]{0}', space=vmem, size = 0x40000, scoped, tag = 'output window, operand 0, single buffered']
    %10 = vsyncpa [#allocation4], 0
    %11 = vsyncpa [#allocation5], 0
    // Predicated region
    $region2: #{tpu_custom_call.1} parent=1 // pred_check
      _
    $region3: #{tpu_custom_call.1} parent=1 // pred_check_branch
      %13 = sbr.rel (0) target = $region5
    $region4: #{tpu_custom_call.1} parent=1 // pred_region
      _
    $region5: #{tpu_custom_call.1} parent=1 // pred_fallthru
      _
    // Predicated region
    $region6: #{tpu_custom_call.1} parent=1 // pred_check
      _
    $region7: #{tpu_custom_call.1} parent=1 // pred_check_branch
      %15 = sbr.rel (0) target = $region9
    $region8: #{tpu_custom_call.1} parent=1 // pred_region
      %17 = vsyncadd [#allocation4], 0
      %s18 = sshll.u32 %s1, 4
      %s19 = int_to_ptr.hbm [resolvable:$true] %s18
      %s20 = sshll.u32 [#allocation3], 4
      %s21 = int_to_ptr.vmem [resolvable:$true] %s20
      %26 = dma.hbm_to_vmem [thread:$0]  %s19, 8192, %s21, [#allocation4], 256, 256, 16
    $region9: #{tpu_custom_call.1} parent=1 // pred_fallthru
      _
    // Predicated region
    $region10: #{tpu_custom_call.1} parent=1 // pred_check
      _
    $region11: #{tpu_custom_call.1} parent=1 // pred_check_branch
      %28 = sbr.rel (0) target = $region13
    $region12: #{tpu_custom_call.1} parent=1 // pred_region
      _
    $region13: #{tpu_custom_call.1} parent=1 // pred_fallthru
      _
    // Predicated region
    $region14: #{tpu_custom_call.1} parent=1 // pred_check
      _
    $region15: #{tpu_custom_call.1} parent=1 // pred_check_branch
      %30 = sbr.rel (0) target = $region17
    $region16: #{tpu_custom_call.1} parent=1 // pred_region
      _
    $region17: #{tpu_custom_call.1} parent=1 // pred_fallthru
      _
    // Predicated region
    $region18: #{tpu_custom_call.1} parent=1 // pred_check
      _
    $region19: #{tpu_custom_call.1} parent=1 // pred_check_branch
      %32 = sbr.rel (0) target = $region21
    $region20: #{tpu_custom_call.1} parent=1 // pred_region
      %34 = dma.done [#allocation4], 8192
    $region21: #{tpu_custom_call.1} parent=1 // pred_fallthru
      _
    %s35 = smul.u32 0, 256
    %s36 = sshra.s32 %s35, 7
    %s37 = sand.u32 %s35, 127
    %s38 = scalar_lea.vmem %s3, %s36
    %v39 = vld [vmem:[%s38] sm:$0x3]
    %v40 = vmul.f32 %v39, 0.5
    %v41 = vld [vmem:[%s2] sm:$0xff]
    %v42 = vld [vmem:[%s2 + $0x8] sm:$0xff]
    %v43 = vld [vmem:[%s2 + $0x10] sm:$0xff]
    %v44 = vld [vmem:[%s2 + $0x18] sm:$0xff]
    %v45 = vld [vmem:[%s2 + $0x20] sm:$0xff]
    %v46 = vld [vmem:[%s2 + $0x28] sm:$0xff]
    %v47 = vld [vmem:[%s2 + $0x30] sm:$0xff]
    %v48 = vld [vmem:[%s2 + $0x38] sm:$0xff]
    %v49 = vld [vmem:[%s2 + $0x40] sm:$0xff]
    %v50 = vld [vmem:[%s2 + $0x48] sm:$0xff]
    %v51 = vld [vmem:[%s2 + $0x50] sm:$0xff]
    %v52 = vld [vmem:[%s2 + $0x58] sm:$0xff]
    %v53 = vld [vmem:[%s2 + $0x60] sm:$0xff]
    %v54 = vld [vmem:[%s2 + $0x68] sm:$0xff]
    %v55 = vld [vmem:[%s2 + $0x70] sm:$0xff]
    %v56 = vld [vmem:[%s2 + $0x78] sm:$0xff]
    %v57 = vld [vmem:[%s2 + $0x80] sm:$0xff]
    %v58 = vld [vmem:[%s2 + $0x88] sm:$0xff]
    %v59 = vld [vmem:[%s2 + $0x90] sm:$0xff]
    %v60 = vld [vmem:[%s2 + $0x98] sm:$0xff]
    %v61 = vld [vmem:[%s2 + $0xa0] sm:$0xff]
    %v62 = vld [vmem:[%s2 + $0xa8] sm:$0xff]
    %v63 = vld [vmem:[%s2 + $0xb0] sm:$0xff]
    %v64 = vld [vmem:[%s2 + $0xb8] sm:$0xff]
    %v65 = vld [vmem:[%s2 + $0xc0] sm:$0xff]
    %v66 = vld [vmem:[%s2 + $0xc8] sm:$0xff]
    %v67 = vld [vmem:[%s2 + $0xd0] sm:$0xff]
    %v68 = vld [vmem:[%s2 + $0xd8] sm:$0xff]
    %v69 = vld [vmem:[%s2 + $0xe0] sm:$0xff]
    %v70 = vld [vmem:[%s2 + $0xe8] sm:$0xff]
    %v71 = vld [vmem:[%s2 + $0xf0] sm:$0xff]
    %v72 = vld [vmem:[%s2 + $0xf8] sm:$0xff]
    %v73 = vmul.f32 %v41, 0.5
    %v74 = vmul.f32 %v42, 0.5
    %v75 = vmul.f32 %v43, 0.5
    %v76 = vmul.f32 %v44, 0.5
    %v77 = vmul.f32 %v45, 0.5
    %v78 = vmul.f32 %v46, 0.5
    %v79 = vmul.f32 %v47, 0.5
    %v80 = vmul.f32 %v48, 0.5
    %v81 = vmul.f32 %v49, 0.5
    %v82 = vmul.f32 %v50, 0.5
    %v83 = vmul.f32 %v51, 0.5
    %v84 = vmul.f32 %v52, 0.5
    %v85 = vmul.f32 %v53, 0.5
    %v86 = vmul.f32 %v54, 0.5
    %v87 = vmul.f32 %v55, 0.5
    %v88 = vmul.f32 %v56, 0.5
    %v89 = vmul.f32 %v57, 0.5
    %v90 = vmul.f32 %v58, 0.5
    %v91 = vmul.f32 %v59, 0.5
    %v92 = vmul.f32 %v60, 0.5
    %v93 = vmul.f32 %v61, 0.5
    %v94 = vmul.f32 %v62, 0.5
    %v95 = vmul.f32 %v63, 0.5
    %v96 = vmul.f32 %v64, 0.5
    %v97 = vmul.f32 %v65, 0.5
    %v98 = vmul.f32 %v66, 0.5
    %v99 = vmul.f32 %v67, 0.5
    %v100 = vmul.f32 %v68, 0.5
    %v101 = vmul.f32 %v69, 0.5
    %v102 = vmul.f32 %v70, 0.5
    %v103 = vmul.f32 %v71, 0.5
    %v104 = vmul.f32 %v72, 0.5
    %v106 = vperm.slane %v40, 0
    %v107 = vperm.slane %v40, 1
    %111 = vset.pattern.permute.xlu0 0
    %112 = vperm.xlu0 %111, %v73
    %v113 = vpop.permute.xlu0 %112
    %116 = vset.pattern.permute.xlu0 0
    %117 = vperm.xlu0 %116, %v74
    %v118 = vpop.permute.xlu0 %117
    %121 = vset.pattern.permute.xlu0 0
    %122 = vperm.xlu0 %121, %v75
    %v123 = vpop.permute.xlu0 %122
    %126 = vset.pattern.permute.xlu0 0
    %127 = vperm.xlu0 %126, %v76
    %v128 = vpop.permute.xlu0 %127
    %131 = vset.pattern.permute.xlu0 0
    %132 = vperm.xlu0 %131, %v77
    %v133 = vpop.permute.xlu0 %132
    %136 = vset.pattern.permute.xlu0 0
    %137 = vperm.xlu0 %136, %v78
    %v138 = vpop.permute.xlu0 %137
    %141 = vset.pattern.permute.xlu0 0
    %142 = vperm.xlu0 %141, %v79
    %v143 = vpop.permute.xlu0 %142
    %146 = vset.pattern.permute.xlu0 0
    %147 = vperm.xlu0 %146, %v80
    %v148 = vpop.permute.xlu0 %147
    %151 = vset.pattern.permute.xlu0 0
    %152 = vperm.xlu0 %151, %v81
    %v153 = vpop.permute.xlu0 %152
    %156 = vset.pattern.permute.xlu0 0
    %157 = vperm.xlu0 %156, %v82
    %v158 = vpop.permute.xlu0 %157
    %161 = vset.pattern.permute.xlu0 0
    %162 = vperm.xlu0 %161, %v83
    %v163 = vpop.permute.xlu0 %162
    %166 = vset.pattern.permute.xlu0 0
    %167 = vperm.xlu0 %166, %v84
    %v168 = vpop.permute.xlu0 %167
    %171 = vset.pattern.permute.xlu0 0
    %172 = vperm.xlu0 %171, %v85
    %v173 = vpop.permute.xlu0 %172
    %176 = vset.pattern.permute.xlu0 0
    %177 = vperm.xlu0 %176, %v86
    %v178 = vpop.permute.xlu0 %177
    %181 = vset.pattern.permute.xlu0 0
    %182 = vperm.xlu0 %181, %v87
    %v183 = vpop.permute.xlu0 %182
    %186 = vset.pattern.permute.xlu0 0
    %187 = vperm.xlu0 %186, %v88
    %v188 = vpop.permute.xlu0 %187
    %191 = vset.pattern.permute.xlu0 0
    %192 = vperm.xlu0 %191, %v89
    %v193 = vpop.permute.xlu0 %192
    %196 = vset.pattern.permute.xlu0 0
    %197 = vperm.xlu0 %196, %v90
    %v198 = vpop.permute.xlu0 %197
    %201 = vset.pattern.permute.xlu0 0
    %202 = vperm.xlu0 %201, %v91
    %v203 = vpop.permute.xlu0 %202
    %206 = vset.pattern.permute.xlu0 0
    %207 = vperm.xlu0 %206, %v92
    %v208 = vpop.permute.xlu0 %207
    %211 = vset.pattern.permute.xlu0 0
    %212 = vperm.xlu0 %211, %v93
    %v213 = vpop.permute.xlu0 %212
    %216 = vset.pattern.permute.xlu0 0
    %217 = vperm.xlu0 %216, %v94
    %v218 = vpop.permute.xlu0 %217
    %221 = vset.pattern.permute.xlu0 0
    %222 = vperm.xlu0 %221, %v95
    %v223 = vpop.permute.xlu0 %222
    %226 = vset.pattern.permute.xlu0 0
    %227 = vperm.xlu0 %226, %v96
    %v228 = vpop.permute.xlu0 %227
    %231 = vset.pattern.permute.xlu0 0
    %232 = vperm.xlu0 %231, %v97
    %v233 = vpop.permute.xlu0 %232
    %236 = vset.pattern.permute.xlu0 0
    %237 = vperm.xlu0 %236, %v98
    %v238 = vpop.permute.xlu0 %237
    %241 = vset.pattern.permute.xlu0 0
    %242 = vperm.xlu0 %241, %v99
    %v243 = vpop.permute.xlu0 %242
    %246 = vset.pattern.permute.xlu0 0
    %247 = vperm.xlu0 %246, %v100
    %v248 = vpop.permute.xlu0 %247
    %251 = vset.pattern.permute.xlu0 0
    %252 = vperm.xlu0 %251, %v101
    %v253 = vpop.permute.xlu0 %252
    %256 = vset.pattern.permute.xlu0 0
    %257 = vperm.xlu0 %256, %v102
    %v258 = vpop.permute.xlu0 %257
    %261 = vset.pattern.permute.xlu0 0
    %262 = vperm.xlu0 %261, %v103
    %v263 = vpop.permute.xlu0 %262
    %266 = vset.pattern.permute.xlu0 0
    %267 = vperm.xlu0 %266, %v104
    %v268 = vpop.permute.xlu0 %267
    %v270 = vsub.f32 %v106, %v113
    %v271 = vsub.f32 %v107, %v113
    %v272 = vsub.f32 %v106, %v118
    %v273 = vsub.f32 %v107, %v118
    %v274 = vsub.f32 %v106, %v123
    %v275 = vsub.f32 %v107, %v123
    %v276 = vsub.f32 %v106, %v128
    %v277 = vsub.f32 %v107, %v128
    %v278 = vsub.f32 %v106, %v133
    %v279 = vsub.f32 %v107, %v133
    %v280 = vsub.f32 %v106, %v138
    %v281 = vsub.f32 %v107, %v138
    %v282 = vsub.f32 %v106, %v143
    %v283 = vsub.f32 %v107, %v143
    %v284 = vsub.f32 %v106, %v148
    %v285 = vsub.f32 %v107, %v148
    %v286 = vsub.f32 %v106, %v153
    %v287 = vsub.f32 %v107, %v153
    %v288 = vsub.f32 %v106, %v158
    %v289 = vsub.f32 %v107, %v158
    %v290 = vsub.f32 %v106, %v163
    %v291 = vsub.f32 %v107, %v163
    %v292 = vsub.f32 %v106, %v168
    %v293 = vsub.f32 %v107, %v168
    %v294 = vsub.f32 %v106, %v173
    %v295 = vsub.f32 %v107, %v173
    %v296 = vsub.f32 %v106, %v178
    %v297 = vsub.f32 %v107, %v178
    %v298 = vsub.f32 %v106, %v183
    %v299 = vsub.f32 %v107, %v183
    %v300 = vsub.f32 %v106, %v188
    %v301 = vsub.f32 %v107, %v188
    %v302 = vsub.f32 %v106, %v193
    %v303 = vsub.f32 %v107, %v193
    %v304 = vsub.f32 %v106, %v198
    %v305 = vsub.f32 %v107, %v198
    %v306 = vsub.f32 %v106, %v203
    %v307 = vsub.f32 %v107, %v203
    %v308 = vsub.f32 %v106, %v208
    %v309 = vsub.f32 %v107, %v208
    %v310 = vsub.f32 %v106, %v213
    %v311 = vsub.f32 %v107, %v213
    %v312 = vsub.f32 %v106, %v218
    %v313 = vsub.f32 %v107, %v218
    %v314 = vsub.f32 %v106, %v223
    %v315 = vsub.f32 %v107, %v223
    %v316 = vsub.f32 %v106, %v228
    %v317 = vsub.f32 %v107, %v228
    %v318 = vsub.f32 %v106, %v233
    %v319 = vsub.f32 %v107, %v233
    %v320 = vsub.f32 %v106, %v238
    %v321 = vsub.f32 %v107, %v238
    %v322 = vsub.f32 %v106, %v243
    %v323 = vsub.f32 %v107, %v243
    %v324 = vsub.f32 %v106, %v248
    %v325 = vsub.f32 %v107, %v248
    %v326 = vsub.f32 %v106, %v253
    %v327 = vsub.f32 %v107, %v253
    %v328 = vsub.f32 %v106, %v258
    %v329 = vsub.f32 %v107, %v258
    %v330 = vsub.f32 %v106, %v263
    %v331 = vsub.f32 %v107, %v263
    %v332 = vsub.f32 %v106, %v268
    %v333 = vsub.f32 %v107, %v268
    %v334 = vtanh.pop %v270
    %v335 = vtanh.pop %v271
    %v336 = vtanh.pop %v272
    %v337 = vtanh.pop %v273
    %v338 = vtanh.pop %v274
    %v339 = vtanh.pop %v275
    %v340 = vtanh.pop %v276
    %v341 = vtanh.pop %v277
    %v342 = vtanh.pop %v278
    %v343 = vtanh.pop %v279
    %v344 = vtanh.pop %v280
    %v345 = vtanh.pop %v281
    %v346 = vtanh.pop %v282
    %v347 = vtanh.pop %v283
    %v348 = vtanh.pop %v284
    %v349 = vtanh.pop %v285
    %v350 = vtanh.pop %v286
    %v351 = vtanh.pop %v287
    %v352 = vtanh.pop %v288
    %v353 = vtanh.pop %v289
    %v354 = vtanh.pop %v290
    %v355 = vtanh.pop %v291
    %v356 = vtanh.pop %v292
    %v357 = vtanh.pop %v293
    %v358 = vtanh.pop %v294
    %v359 = vtanh.pop %v295
    %v360 = vtanh.pop %v296
    %v361 = vtanh.pop %v297
    %v362 = vtanh.pop %v298
    %v363 = vtanh.pop %v299
    %v364 = vtanh.pop %v300
    %v365 = vtanh.pop %v301
    %v366 = vtanh.pop %v302
    %v367 = vtanh.pop %v303
    %v368 = vtanh.pop %v304
    %v369 = vtanh.pop %v305
    %v370 = vtanh.pop %v306
    %v371 = vtanh.pop %v307
    %v372 = vtanh.pop %v308
    %v373 = vtanh.pop %v309
    %v374 = vtanh.pop %v310
    %v375 = vtanh.pop %v311
    %v376 = vtanh.pop %v312
    %v377 = vtanh.pop %v313
    %v378 = vtanh.pop %v314
    %v379 = vtanh.pop %v315
    %v380 = vtanh.pop %v316
    %v381 = vtanh.pop %v317
    %v382 = vtanh.pop %v318
    %v383 = vtanh.pop %v319
    %v384 = vtanh.pop %v320
    %v385 = vtanh.pop %v321
    %v386 = vtanh.pop %v322
    %v387 = vtanh.pop %v323
    %v388 = vtanh.pop %v324
    %v389 = vtanh.pop %v325
    %v390 = vtanh.pop %v326
    %v391 = vtanh.pop %v327
    %v392 = vtanh.pop %v328
    %v393 = vtanh.pop %v329
    %v394 = vtanh.pop %v330
    %v395 = vtanh.pop %v331
    %v396 = vtanh.pop %v332
    %v397 = vtanh.pop %v333
    %v398 = vadd.f32 %v334, 1.0
    %v399 = vadd.f32 %v335, 1.0
    %v400 = vadd.f32 %v336, 1.0
    %v401 = vadd.f32 %v337, 1.0
    %v402 = vadd.f32 %v338, 1.0
    %v403 = vadd.f32 %v339, 1.0
    %v404 = vadd.f32 %v340, 1.0
    %v405 = vadd.f32 %v341, 1.0
    %v406 = vadd.f32 %v342, 1.0
    %v407 = vadd.f32 %v343, 1.0
    %v408 = vadd.f32 %v344, 1.0
    %v409 = vadd.f32 %v345, 1.0
    %v410 = vadd.f32 %v346, 1.0
    %v411 = vadd.f32 %v347, 1.0
    %v412 = vadd.f32 %v348, 1.0
    %v413 = vadd.f32 %v349, 1.0
    %v414 = vadd.f32 %v350, 1.0
    %v415 = vadd.f32 %v351, 1.0
    %v416 = vadd.f32 %v352, 1.0
    %v417 = vadd.f32 %v353, 1.0
    %v418 = vadd.f32 %v354, 1.0
    %v419 = vadd.f32 %v355, 1.0
    %v420 = vadd.f32 %v356, 1.0
    %v421 = vadd.f32 %v357, 1.0
    %v422 = vadd.f32 %v358, 1.0
    %v423 = vadd.f32 %v359, 1.0
    %v424 = vadd.f32 %v360, 1.0
    %v425 = vadd.f32 %v361, 1.0
    %v426 = vadd.f32 %v362, 1.0
    %v427 = vadd.f32 %v363, 1.0
    %v428 = vadd.f32 %v364, 1.0
    %v429 = vadd.f32 %v365, 1.0
    %v430 = vadd.f32 %v366, 1.0
    %v431 = vadd.f32 %v367, 1.0
    %v432 = vadd.f32 %v368, 1.0
    %v433 = vadd.f32 %v369, 1.0
    %v434 = vadd.f32 %v370, 1.0
    %v435 = vadd.f32 %v371, 1.0
    %v436 = vadd.f32 %v372, 1.0
    %v437 = vadd.f32 %v373, 1.0
    %v438 = vadd.f32 %v374, 1.0
    %v439 = vadd.f32 %v375, 1.0
    %v440 = vadd.f32 %v376, 1.0
    %v441 = vadd.f32 %v377, 1.0
    %v442 = vadd.f32 %v378, 1.0
    %v443 = vadd.f32 %v379, 1.0
    %v444 = vadd.f32 %v380, 1.0
    %v445 = vadd.f32 %v381, 1.0
    %v446 = vadd.f32 %v382, 1.0
    %v447 = vadd.f32 %v383, 1.0
    %v448 = vadd.f32 %v384, 1.0
    %v449 = vadd.f32 %v385, 1.0
    %v450 = vadd.f32 %v386, 1.0
    %v451 = vadd.f32 %v387, 1.0
    %v452 = vadd.f32 %v388, 1.0
    %v453 = vadd.f32 %v389, 1.0
    %v454 = vadd.f32 %v390, 1.0
    %v455 = vadd.f32 %v391, 1.0
    %v456 = vadd.f32 %v392, 1.0
    %v457 = vadd.f32 %v393, 1.0
    %v458 = vadd.f32 %v394, 1.0
    %v459 = vadd.f32 %v395, 1.0
    %v460 = vadd.f32 %v396, 1.0
    %v461 = vadd.f32 %v397, 1.0
    %s462 = sld [smem:[#allocation2]]
    %vm463 = vcmp.ge.f32.partialorder %v270, 0.0
    %vm464 = vcmp.ge.f32.partialorder %v271, 0.0
    %vm465 = vcmp.ge.f32.partialorder %v272, 0.0
    %vm466 = vcmp.ge.f32.partialorder %v273, 0.0
    %vm467 = vcmp.ge.f32.partialorder %v274, 0.0
    %vm468 = vcmp.ge.f32.partialorder %v275, 0.0
    %vm469 = vcmp.ge.f32.partialorder %v276, 0.0
    %vm470 = vcmp.ge.f32.partialorder %v277, 0.0
    %vm471 = vcmp.ge.f32.partialorder %v278, 0.0
    %vm472 = vcmp.ge.f32.partialorder %v279, 0.0
    %vm473 = vcmp.ge.f32.partialorder %v280, 0.0
    %vm474 = vcmp.ge.f32.partialorder %v281, 0.0
    %vm475 = vcmp.ge.f32.partialorder %v282, 0.0
    %vm476 = vcmp.ge.f32.partialorder %v283, 0.0
    %vm477 = vcmp.ge.f32.partialorder %v284, 0.0
    %vm478 = vcmp.ge.f32.partialorder %v285, 0.0
    %vm479 = vcmp.ge.f32.partialorder %v286, 0.0
    %vm480 = vcmp.ge.f32.partialorder %v287, 0.0
    %vm481 = vcmp.ge.f32.partialorder %v288, 0.0
    %vm482 = vcmp.ge.f32.partialorder %v289, 0.0
    %vm483 = vcmp.ge.f32.partialorder %v290, 0.0
    %vm484 = vcmp.ge.f32.partialorder %v291, 0.0
    %vm485 = vcmp.ge.f32.partialorder %v292, 0.0
    %vm486 = vcmp.ge.f32.partialorder %v293, 0.0
    %vm487 = vcmp.ge.f32.partialorder %v294, 0.0
    %vm488 = vcmp.ge.f32.partialorder %v295, 0.0
    %vm489 = vcmp.ge.f32.partialorder %v296, 0.0
    %vm490 = vcmp.ge.f32.partialorder %v297, 0.0
    %vm491 = vcmp.ge.f32.partialorder %v298, 0.0
    %vm492 = vcmp.ge.f32.partialorder %v299, 0.0
    %vm493 = vcmp.ge.f32.partialorder %v300, 0.0
    %vm494 = vcmp.ge.f32.partialorder %v301, 0.0
    %vm495 = vcmp.ge.f32.partialorder %v302, 0.0
    %vm496 = vcmp.ge.f32.partialorder %v303, 0.0
    %vm497 = vcmp.ge.f32.partialorder %v304, 0.0
    %vm498 = vcmp.ge.f32.partialorder %v305, 0.0
    %vm499 = vcmp.ge.f32.partialorder %v306, 0.0
    %vm500 = vcmp.ge.f32.partialorder %v307, 0.0
    %vm501 = vcmp.ge.f32.partialorder %v308, 0.0
    %vm502 = vcmp.ge.f32.partialorder %v309, 0.0
    %vm503 = vcmp.ge.f32.partialorder %v310, 0.0
    %vm504 = vcmp.ge.f32.partialorder %v311, 0.0
    %vm505 = vcmp.ge.f32.partialorder %v312, 0.0
    %vm506 = vcmp.ge.f32.partialorder %v313, 0.0
    %vm507 = vcmp.ge.f32.partialorder %v314, 0.0
    %vm508 = vcmp.ge.f32.partialorder %v315, 0.0
    %vm509 = vcmp.ge.f32.partialorder %v316, 0.0
    %vm510 = vcmp.ge.f32.partialorder %v317, 0.0
    %vm511 = vcmp.ge.f32.partialorder %v318, 0.0
    %vm512 = vcmp.ge.f32.partialorder %v319, 0.0
    %vm513 = vcmp.ge.f32.partialorder %v320, 0.0
    %vm514 = vcmp.ge.f32.partialorder %v321, 0.0
    %vm515 = vcmp.ge.f32.partialorder %v322, 0.0
    %vm516 = vcmp.ge.f32.partialorder %v323, 0.0
    %vm517 = vcmp.ge.f32.partialorder %v324, 0.0
    %vm518 = vcmp.ge.f32.partialorder %v325, 0.0
    %vm519 = vcmp.ge.f32.partialorder %v326, 0.0
    %vm520 = vcmp.ge.f32.partialorder %v327, 0.0
    %vm521 = vcmp.ge.f32.partialorder %v328, 0.0
    %vm522 = vcmp.ge.f32.partialorder %v329, 0.0
    %vm523 = vcmp.ge.f32.partialorder %v330, 0.0
    %vm524 = vcmp.ge.f32.partialorder %v331, 0.0
    %vm525 = vcmp.ge.f32.partialorder %v332, 0.0
    %vm526 = vcmp.ge.f32.partialorder %v333, 0.0
    %v527 = vstv %s462
    %v528 = vsel %vm463, %v398, %v527
    %v529 = vsel %vm464, %v399, %v527
    %v530 = vsel %vm465, %v400, %v527
    %v531 = vsel %vm466, %v401, %v527
    %v532 = vsel %vm467, %v402, %v527
    %v533 = vsel %vm468, %v403, %v527
    %v534 = vsel %vm469, %v404, %v527
    %v535 = vsel %vm470, %v405, %v527
    %v536 = vsel %vm471, %v406, %v527
    %v537 = vsel %vm472, %v407, %v527
    %v538 = vsel %vm473, %v408, %v527
    %v539 = vsel %vm474, %v409, %v527
    %v540 = vsel %vm475, %v410, %v527
    %v541 = vsel %vm476, %v411, %v527
    %v542 = vsel %vm477, %v412, %v527
    %v543 = vsel %vm478, %v413, %v527
    %v544 = vsel %vm479, %v414, %v527
    %v545 = vsel %vm480, %v415, %v527
    %v546 = vsel %vm481, %v416, %v527
    %v547 = vsel %vm482, %v417, %v527
    %v548 = vsel %vm483, %v418, %v527
    %v549 = vsel %vm484, %v419, %v527
    %v550 = vsel %vm485, %v420, %v527
    %v551 = vsel %vm486, %v421, %v527
    %v552 = vsel %vm487, %v422, %v527
    %v553 = vsel %vm488, %v423, %v527
    %v554 = vsel %vm489, %v424, %v527
    %v555 = vsel %vm490, %v425, %v527
    %v556 = vsel %vm491, %v426, %v527
    %v557 = vsel %vm492, %v427, %v527
    %v558 = vsel %vm493, %v428, %v527
    %v559 = vsel %vm494, %v429, %v527
    %v560 = vsel %vm495, %v430, %v527
    %v561 = vsel %vm496, %v431, %v527
    %v562 = vsel %vm497, %v432, %v527
    %v563 = vsel %vm498, %v433, %v527
    %v564 = vsel %vm499, %v434, %v527
    %v565 = vsel %vm500, %v435, %v527
    %v566 = vsel %vm501, %v436, %v527
    %v567 = vsel %vm502, %v437, %v527
    %v568 = vsel %vm503, %v438, %v527
    %v569 = vsel %vm504, %v439, %v527
    %v570 = vsel %vm505, %v440, %v527
    %v571 = vsel %vm506, %v441, %v527
    %v572 = vsel %vm507, %v442, %v527
    %v573 = vsel %vm508, %v443, %v527
    %v574 = vsel %vm509, %v444, %v527
    %v575 = vsel %vm510, %v445, %v527
    %v576 = vsel %vm511, %v446, %v527
    %v577 = vsel %vm512, %v447, %v527
    %v578 = vsel %vm513, %v448, %v527
    %v579 = vsel %vm514, %v449, %v527
    %v580 = vsel %vm515, %v450, %v527
    %v581 = vsel %vm516, %v451, %v527
    %v582 = vsel %vm517, %v452, %v527
    %v583 = vsel %vm518, %v453, %v527
    %v584 = vsel %vm519, %v454, %v527
    %v585 = vsel %vm520, %v455, %v527
    %v586 = vsel %vm521, %v456, %v527
    %v587 = vsel %vm522, %v457, %v527
    %v588 = vsel %vm523, %v458, %v527
    %v589 = vsel %vm524, %v459, %v527
    %v590 = vsel %vm525, %v460, %v527
    %v591 = vsel %vm526, %v461, %v527
    %v592 = vld [vmem:[#allocation3] sm:$0xff]
    %v593 = vld [vmem:[#allocation3 + $0x8] sm:$0xff]
    %v594 = vld [vmem:[#allocation3 + $0x10] sm:$0xff]
    %v595 = vld [vmem:[#allocation3 + $0x18] sm:$0xff]
    %v596 = vld [vmem:[#allocation3 + $0x20] sm:$0xff]
    %v597 = vld [vmem:[#allocation3 + $0x28] sm:$0xff]
    %v598 = vld [vmem:[#allocation3 + $0x30] sm:$0xff]
    %v599 = vld [vmem:[#allocation3 + $0x38] sm:$0xff]
    %v600 = vld [vmem:[#allocation3 + $0x40] sm:$0xff]
    %v601 = vld [vmem:[#allocation3 + $0x48] sm:$0xff]
    %v602 = vld [vmem:[#allocation3 + $0x50] sm:$0xff]
    %v603 = vld [vmem:[#allocation3 + $0x58] sm:$0xff]
    %v604 = vld [vmem:[#allocation3 + $0x60] sm:$0xff]
    %v605 = vld [vmem:[#allocation3 + $0x68] sm:$0xff]
    %v606 = vld [vmem:[#allocation3 + $0x70] sm:$0xff]
    %v607 = vld [vmem:[#allocation3 + $0x78] sm:$0xff]
    %v608 = vld [vmem:[#allocation3 + $0x80] sm:$0xff]
    %v609 = vld [vmem:[#allocation3 + $0x88] sm:$0xff]
    %v610 = vld [vmem:[#allocation3 + $0x90] sm:$0xff]
    %v611 = vld [vmem:[#allocation3 + $0x98] sm:$0xff]
    %v612 = vld [vmem:[#allocation3 + $0xa0] sm:$0xff]
    %v613 = vld [vmem:[#allocation3 + $0xa8] sm:$0xff]
    %v614 = vld [vmem:[#allocation3 + $0xb0] sm:$0xff]
    %v615 = vld [vmem:[#allocation3 + $0xb8] sm:$0xff]
    %v616 = vld [vmem:[#allocation3 + $0xc0] sm:$0xff]
    %v617 = vld [vmem:[#allocation3 + $0xc8] sm:$0xff]
    %v618 = vld [vmem:[#allocation3 + $0xd0] sm:$0xff]
    %v619 = vld [vmem:[#allocation3 + $0xd8] sm:$0xff]
    %v620 = vld [vmem:[#allocation3 + $0xe0] sm:$0xff]
    %v621 = vld [vmem:[#allocation3 + $0xe8] sm:$0xff]
    %v622 = vld [vmem:[#allocation3 + $0xf0] sm:$0xff]
    %v623 = vld [vmem:[#allocation3 + $0xf8] sm:$0xff]
    %v624 = vld [vmem:[#allocation3 + $0x100] sm:$0xff]
    %v625 = vld [vmem:[#allocation3 + $0x108] sm:$0xff]
    %v626 = vld [vmem:[#allocation3 + $0x110] sm:$0xff]
    %v627 = vld [vmem:[#allocation3 + $0x118] sm:$0xff]
    %v628 = vld [vmem:[#allocation3 + $0x120] sm:$0xff]
    %v629 = vld [vmem:[#allocation3 + $0x128] sm:$0xff]
    %v630 = vld [vmem:[#allocation3 + $0x130] sm:$0xff]
    %v631 = vld [vmem:[#allocation3 + $0x138] sm:$0xff]
    %v632 = vld [vmem:[#allocation3 + $0x140] sm:$0xff]
    %v633 = vld [vmem:[#allocation3 + $0x148] sm:$0xff]
    %v634 = vld [vmem:[#allocation3 + $0x150] sm:$0xff]
    %v635 = vld [vmem:[#allocation3 + $0x158] sm:$0xff]
    %v636 = vld [vmem:[#allocation3 + $0x160] sm:$0xff]
    %v637 = vld [vmem:[#allocation3 + $0x168] sm:$0xff]
    %v638 = vld [vmem:[#allocation3 + $0x170] sm:$0xff]
    %v639 = vld [vmem:[#allocation3 + $0x178] sm:$0xff]
    %v640 = vld [vmem:[#allocation3 + $0x180] sm:$0xff]
    %v641 = vld [vmem:[#allocation3 + $0x188] sm:$0xff]
    %v642 = vld [vmem:[#allocation3 + $0x190] sm:$0xff]
    %v643 = vld [vmem:[#allocation3 + $0x198] sm:$0xff]
    %v644 = vld [vmem:[#allocation3 + $0x1a0] sm:$0xff]
    %v645 = vld [vmem:[#allocation3 + $0x1a8] sm:$0xff]
    %v646 = vld [vmem:[#allocation3 + $0x1b0] sm:$0xff]
    %v647 = vld [vmem:[#allocation3 + $0x1b8] sm:$0xff]
    %v648 = vld [vmem:[#allocation3 + $0x1c0] sm:$0xff]
    %v649 = vld [vmem:[#allocation3 + $0x1c8] sm:$0xff]
    %v650 = vld [vmem:[#allocation3 + $0x1d0] sm:$0xff]
    %v651 = vld [vmem:[#allocation3 + $0x1d8] sm:$0xff]
    %v652 = vld [vmem:[#allocation3 + $0x1e0] sm:$0xff]
    %v653 = vld [vmem:[#allocation3 + $0x1e8] sm:$0xff]
    %v654 = vld [vmem:[#allocation3 + $0x1f0] sm:$0xff]
    %v655 = vld [vmem:[#allocation3 + $0x1f8] sm:$0xff]
    %v656 = vmul.f32 %v592, %v528
    %v657 = vmul.f32 %v593, %v529
    %v658 = vmul.f32 %v594, %v530
    %v659 = vmul.f32 %v595, %v531
    %v660 = vmul.f32 %v596, %v532
    %v661 = vmul.f32 %v597, %v533
    %v662 = vmul.f32 %v598, %v534
    %v663 = vmul.f32 %v599, %v535
    %v664 = vmul.f32 %v600, %v536
    %v665 = vmul.f32 %v601, %v537
    %v666 = vmul.f32 %v602, %v538
    %v667 = vmul.f32 %v603, %v539
    %v668 = vmul.f32 %v604, %v540
    %v669 = vmul.f32 %v605, %v541
    %v670 = vmul.f32 %v606, %v542
    %v671 = vmul.f32 %v607, %v543
    %v672 = vmul.f32 %v608, %v544
    %v673 = vmul.f32 %v609, %v545
    %v674 = vmul.f32 %v610, %v546
    %v675 = vmul.f32 %v611, %v547
    %v676 = vmul.f32 %v612, %v548
    %v677 = vmul.f32 %v613, %v549
    %v678 = vmul.f32 %v614, %v550
    %v679 = vmul.f32 %v615, %v551
    %v680 = vmul.f32 %v616, %v552
    %v681 = vmul.f32 %v617, %v553
    %v682 = vmul.f32 %v618, %v554
    %v683 = vmul.f32 %v619, %v555
    %v684 = vmul.f32 %v620, %v556
    %v685 = vmul.f32 %v621, %v557
    %v686 = vmul.f32 %v622, %v558
    %v687 = vmul.f32 %v623, %v559
    %v688 = vmul.f32 %v624, %v560
    %v689 = vmul.f32 %v625, %v561
    %v690 = vmul.f32 %v626, %v562
    %v691 = vmul.f32 %v627, %v563
    %v692 = vmul.f32 %v628, %v564
    %v693 = vmul.f32 %v629, %v565
    %v694 = vmul.f32 %v630, %v566
    %v695 = vmul.f32 %v631, %v567
    %v696 = vmul.f32 %v632, %v568
    %v697 = vmul.f32 %v633, %v569
    %v698 = vmul.f32 %v634, %v570
    %v699 = vmul.f32 %v635, %v571
    %v700 = vmul.f32 %v636, %v572
    %v701 = vmul.f32 %v637, %v573
    %v702 = vmul.f32 %v638, %v574
    %v703 = vmul.f32 %v639, %v575
    %v704 = vmul.f32 %v640, %v576
    %v705 = vmul.f32 %v641, %v577
    %v706 = vmul.f32 %v642, %v578
    %v707 = vmul.f32 %v643, %v579
    %v708 = vmul.f32 %v644, %v580
    %v709 = vmul.f32 %v645, %v581
    %v710 = vmul.f32 %v646, %v582
    %v711 = vmul.f32 %v647, %v583
    %v712 = vmul.f32 %v648, %v584
    %v713 = vmul.f32 %v649, %v585
    %v714 = vmul.f32 %v650, %v586
    %v715 = vmul.f32 %v651, %v587
    %v716 = vmul.f32 %v652, %v588
    %v717 = vmul.f32 %v653, %v589
    %v718 = vmul.f32 %v654, %v590
    %v719 = vmul.f32 %v655, %v591
    %720 = vst [vmem:[#allocation6] sm:$0xff] %v656
    %721 = vst [vmem:[#allocation6 + $0x8] sm:$0xff] %v657
    %722 = vst [vmem:[#allocation6 + $0x10] sm:$0xff] %v658
    %723 = vst [vmem:[#allocation6 + $0x18] sm:$0xff] %v659
    %724 = vst [vmem:[#allocation6 + $0x20] sm:$0xff] %v660
    %725 = vst [vmem:[#allocation6 + $0x28] sm:$0xff] %v661
    %726 = vst [vmem:[#allocation6 + $0x30] sm:$0xff] %v662
    %727 = vst [vmem:[#allocation6 + $0x38] sm:$0xff] %v663
    %728 = vst [vmem:[#allocation6 + $0x40] sm:$0xff] %v664
    %729 = vst [vmem:[#allocation6 + $0x48] sm:$0xff] %v665
    %730 = vst [vmem:[#allocation6 + $0x50] sm:$0xff] %v666
    %731 = vst [vmem:[#allocation6 + $0x58] sm:$0xff] %v667
    %732 = vst [vmem:[#allocation6 + $0x60] sm:$0xff] %v668
    %733 = vst [vmem:[#allocation6 + $0x68] sm:$0xff] %v669
    %734 = vst [vmem:[#allocation6 + $0x70] sm:$0xff] %v670
    %735 = vst [vmem:[#allocation6 + $0x78] sm:$0xff] %v671
    %736 = vst [vmem:[#allocation6 + $0x80] sm:$0xff] %v672
    %737 = vst [vmem:[#allocation6 + $0x88] sm:$0xff] %v673
    %738 = vst [vmem:[#allocation6 + $0x90] sm:$0xff] %v674
    %739 = vst [vmem:[#allocation6 + $0x98] sm:$0xff] %v675
    %740 = vst [vmem:[#allocation6 + $0xa0] sm:$0xff] %v676
    %741 = vst [vmem:[#allocation6 + $0xa8] sm:$0xff] %v677
    %742 = vst [vmem:[#allocation6 + $0xb0] sm:$0xff] %v678
    %743 = vst [vmem:[#allocation6 + $0xb8] sm:$0xff] %v679
    %744 = vst [vmem:[#allocation6 + $0xc0] sm:$0xff] %v680
    %745 = vst [vmem:[#allocation6 + $0xc8] sm:$0xff] %v681
    %746 = vst [vmem:[#allocation6 + $0xd0] sm:$0xff] %v682
    %747 = vst [vmem:[#allocation6 + $0xd8] sm:$0xff] %v683
    %748 = vst [vmem:[#allocation6 + $0xe0] sm:$0xff] %v684
    %749 = vst [vmem:[#allocation6 + $0xe8] sm:$0xff] %v685
    %750 = vst [vmem:[#allocation6 + $0xf0] sm:$0xff] %v686
    %751 = vst [vmem:[#allocation6 + $0xf8] sm:$0xff] %v687
    %752 = vst [vmem:[#allocation6 + $0x100] sm:$0xff] %v688
    %753 = vst [vmem:[#allocation6 + $0x108] sm:$0xff] %v689
    %754 = vst [vmem:[#allocation6 + $0x110] sm:$0xff] %v690
    %755 = vst [vmem:[#allocation6 + $0x118] sm:$0xff] %v691
    %756 = vst [vmem:[#allocation6 + $0x120] sm:$0xff] %v692
    %757 = vst [vmem:[#allocation6 + $0x128] sm:$0xff] %v693
    %758 = vst [vmem:[#allocation6 + $0x130] sm:$0xff] %v694
    %759 = vst [vmem:[#allocation6 + $0x138] sm:$0xff] %v695
    %760 = vst [vmem:[#allocation6 + $0x140] sm:$0xff] %v696
    %761 = vst [vmem:[#allocation6 + $0x148] sm:$0xff] %v697
    %762 = vst [vmem:[#allocation6 + $0x150] sm:$0xff] %v698
    %763 = vst [vmem:[#allocation6 + $0x158] sm:$0xff] %v699
    %764 = vst [vmem:[#allocation6 + $0x160] sm:$0xff] %v700
    %765 = vst [vmem:[#allocation6 + $0x168] sm:$0xff] %v701
    %766 = vst [vmem:[#allocation6 + $0x170] sm:$0xff] %v702
    %767 = vst [vmem:[#allocation6 + $0x178] sm:$0xff] %v703
    %768 = vst [vmem:[#allocation6 + $0x180] sm:$0xff] %v704
    %769 = vst [vmem:[#allocation6 + $0x188] sm:$0xff] %v705
    %770 = vst [vmem:[#allocation6 + $0x190] sm:$0xff] %v706
    %771 = vst [vmem:[#allocation6 + $0x198] sm:$0xff] %v707
    %772 = vst [vmem:[#allocation6 + $0x1a0] sm:$0xff] %v708
    %773 = vst [vmem:[#allocation6 + $0x1a8] sm:$0xff] %v709
    %774 = vst [vmem:[#allocation6 + $0x1b0] sm:$0xff] %v710
    %775 = vst [vmem:[#allocation6 + $0x1b8] sm:$0xff] %v711
    %776 = vst [vmem:[#allocation6 + $0x1c0] sm:$0xff] %v712
    %777 = vst [vmem:[#allocation6 + $0x1c8] sm:$0xff] %v713
    %778 = vst [vmem:[#allocation6 + $0x1d0] sm:$0xff] %v714
    %779 = vst [vmem:[#allocation6 + $0x1d8] sm:$0xff] %v715
    %780 = vst [vmem:[#allocation6 + $0x1e0] sm:$0xff] %v716
    %781 = vst [vmem:[#allocation6 + $0x1e8] sm:$0xff] %v717
    %782 = vst [vmem:[#allocation6 + $0x1f0] sm:$0xff] %v718
    %783 = vst [vmem:[#allocation6 + $0x1f8] sm:$0xff] %v719
    // Predicated region
    $region22: #{tpu_custom_call.1} parent=1 // pred_check
      _
    $region23: #{tpu_custom_call.1} parent=1 // pred_check_branch
      %785 = sbr.rel (0) target = $region25
    $region24: #{tpu_custom_call.1} parent=1 // pred_region
      %787 = vsyncadd [#allocation5], 0
      %s788 = sshll.u32 [#allocation6], 4
      %s789 = int_to_ptr.vmem [resolvable:$true] %s788
      %s790 = sshll.u32 %s4, 4
      %s791 = int_to_ptr.hbm [resolvable:$true] %s790
      %796 = dma.vmem_to_hbm [thread:$0]  %s789, 8192, %s791, [#allocation5], 256, 256, 16
    $region25: #{tpu_custom_call.1} parent=1 // pred_fallthru
      _
    // Predicated region
    $region26: #{tpu_custom_call.1} parent=1 // pred_check
      _
    $region27: #{tpu_custom_call.1} parent=1 // pred_check_branch
      %798 = sbr.rel (0) target = $region29
    $region28: #{tpu_custom_call.1} parent=1 // pred_region
      %800 = dma.done [#allocation5], 8192
    $region29: #{tpu_custom_call.1} parent=1 // pred_fallthru
      _
    %801 = vsyncpa [#allocation4], 1
    %802 = vsyncpa [#allocation5], 1

</llo_original>
